<compile_context>
chip_gen: v5e
topology: v5e:2x2
jax: 0.10.0
libtpu: 0.0.40
codegen_flags: <defaults>
</compile_context>

<pallas_src>
import jax
import jax.numpy as jnp
from jax import lax
from jax.experimental import pallas as pl
from jax.experimental.pallas import tpu as pltpu


def _linear2_kernel(w_ref, b_ref, x_ref, o_ref):
    """w_ref: SMEM (2, 2); b_ref: SMEM (2,);
    x_ref / o_ref: VMEM (tile_s, 128), features interleaved [f0, f1, f0, f1, ...] on lanes."""
    x = x_ref[...]                               # (tile_s, 128) f32
    # Pair partner: lane l needs lane l^1.  Pairs never straddle the 128-lane row
    # (128 is even), so the cyclic wrap at lanes 0/127 is never selected.
    x_hi = pltpu.roll(x, shift=127, axis=1)      # x_hi[l] == x[l + 1]  (127 == -1 mod 128)
    x_lo = pltpu.roll(x, shift=1, axis=1)        # x_lo[l] == x[l - 1]
    lane = lax.broadcasted_iota(jnp.int32, x.shape, 1)
    is_even = (lane & 1) == 0
    # even lane (feature-0 slot): y0 = w00*x0 + w01*x1 + b0
    y_even = w_ref[0, 0] * x + w_ref[0, 1] * x_hi + b_ref[0]
    # odd lane (feature-1 slot):  y1 = w10*x0 + w11*x1 + b1
    y_odd = w_ref[1, 0] * x_lo + w_ref[1, 1] * x + b_ref[1]
    o_ref[...] = jnp.where(is_even, y_even, y_odd).astype(o_ref.dtype)


def _round_up(x, m):
    return ((x + m - 1) // m) * m


def embedding_net_forward(x, w, b, *, max_tile_s=2048):
    """Forward pass of EmbeddingNet: y = x @ w.T + b (Linear(2, 2)).

    x: (B, 2) f32; w: (2, 2) f32 (PyTorch Linear layout); b: (2,) f32 -> (B, 2) f32.
    """
    B, in_f = x.shape
    out_f, _ = w.shape
    assert in_f == 2 and out_f == 2, "kernel specialized to Linear(2, 2)"

    total = B * in_f
    # Pad the flat interleaved stream only up to one (8, 128) vreg tile (1024 elems);
    # no pad (and no extra HBM pass) when the batch is already aligned.
    padded = _round_up(total, 1024)
    flat = x.reshape(-1)                          # free row-major view, stays interleaved
    if padded != total:
        flat = jnp.pad(flat, (0, padded - total))
    s_rows = padded // 128                        # multiple of 8 sublanes
    x2d = flat.reshape(s_rows, 128)               # free row-major view

    # Sublane-axis tiling: multiple of 8, ~1 MiB per tile (near HBM roofline, tiny
    # double-buffered VMEM footprint on v5e/v6e/v7x), and at least 2 tiles whenever
    # possible so the "parallel" axis actually spans both v7x TensorCores.
    max_tile_s = max(8, (max_tile_s // 8) * 8)
    tile_s = min(max_tile_s, max(8, _round_up(pl.cdiv(s_rows, 2), 8)))
    grid = (pl.cdiv(s_rows, tile_s),)

    y2d = pl.pallas_call(
        _linear2_kernel,
        out_shape=jax.ShapeDtypeStruct((s_rows, 128), x.dtype),
        grid_spec=pltpu.PrefetchScalarGridSpec(
            num_scalar_prefetch=0,
            grid=grid,
            in_specs=[
                # Tiny weight / bias: whole arrays in SMEM, read as scalars.
                pl.BlockSpec(memory_space=pltpu.MemorySpace.SMEM),
                pl.BlockSpec(memory_space=pltpu.MemorySpace.SMEM),
                # Lane/sublane-dense interleaved activation stream.
                pl.BlockSpec((tile_s, 128), lambda i: (i, 0)),
            ],
            out_specs=pl.BlockSpec((tile_s, 128), lambda i: (i, 0)),
        ),
        compiler_params=pltpu.CompilerParams(
            dimension_semantics=("parallel",),    # independent batch tiles
        ),
    )(w, b, x2d)

    return y2d.reshape(-1)[:total].reshape(B, out_f)


def reference_forward(x, w, b):
    return x @ w.T + b[None, :]


if __name__ == "__main__":
    key = jax.random.PRNGKey(0)
    kx, kw, kb, kx2 = jax.random.split(key, 4)

    in_features, out_features = 2, 2
    # Deterministic synthetic parameters (PyTorch Linear shapes: W (out, in), b (out,)).
    w = jax.random.uniform(kw, (out_features, in_features), dtype=jnp.float32,
                           minval=-0.7, maxval=0.7)
    b = jax.random.uniform(kb, (out_features,), dtype=jnp.float32,
                           minval=-0.7, maxval=0.7)

    # Small, unaligned batch (exercises the padded-tail path).
    x_small = jax.random.normal(kx, (8, in_features), dtype=jnp.float32)
    y_small = jax.block_until_ready(embedding_net_forward(x_small, w, b))
    assert y_small.shape == (8, out_features)
    assert jnp.allclose(y_small, reference_forward(x_small, w, b),
                        atol=1e-5, rtol=1e-5), "mismatch vs reference (small)"

    # Larger aligned batch (no padding pass, multiple grid tiles).
    x_big = jax.random.normal(kx2, (4096, in_features), dtype=jnp.float32)
    y_big = jax.block_until_ready(embedding_net_forward(x_big, w, b))
    assert jnp.allclose(y_big, reference_forward(x_big, w, b),
                        atol=1e-5, rtol=1e-5), "mismatch vs reference (big)"

    print("KERNEL_OK")
</pallas_src>

<mosaic_0001>
module attributes {stable_mosaic.version = 11 : i64} {
  func.func @_linear2_kernel(%arg0: i32, %arg1: memref<2x2xf32, #tpu.memory_space<smem>>, %arg2: memref<2xf32, #tpu.memory_space<smem>>, %arg3: memref<8x128xf32, #tpu.memory_space<vmem>>, %arg4: memref<8x128xf32, #tpu.memory_space<vmem>>) attributes {dimension_semantics = [#tpu.dimension_semantics<parallel>], iteration_bounds = array<i64: 1>, scalar_prefetch = 0 : i64, scratch_operands = 0 : i64, tpu.core_type = #tpu.core_type<tc>, window_params = [{transform_indices = @transform_0, window_bounds = array<i64: 2, 2>}, {transform_indices = @transform_1, window_bounds = array<i64: 2>}, {transform_indices = @transform_2, window_bounds = array<i64: 8, 128>}, {transform_indices = @transform_3, window_bounds = array<i64: 8, 128>}]} {
    %c0 = arith.constant 0 : index
    %c0_0 = arith.constant 0 : index
    %0 = vector.load %arg3[%c0, %c0_0] : memref<8x128xf32, #tpu.memory_space<vmem>>, vector<8x128xf32>
    %c127_i32 = arith.constant 127 : i32
    %1 = tpu.dynamic_rotate %0 by %c127_i32 dim 1 : vector<8x128xf32>, i32 -> vector<8x128xf32>
    %c1_i32 = arith.constant 1 : i32
    %2 = tpu.dynamic_rotate %0 by %c1_i32 dim 1 : vector<8x128xf32>, i32 -> vector<8x128xf32>
    %3 = tpu.iota {dimensions = array<i32: 1>} : vector<8x128xi32>
    %c1_i32_1 = arith.constant 1 : i32
    %4 = vector.broadcast %c1_i32_1 : i32 to vector<8x128xi32>
    %5 = arith.andi %3, %4 : vector<8x128xi32>
    %c0_i32 = arith.constant 0 : i32
    %6 = vector.broadcast %c0_i32 : i32 to vector<8x128xi32>
    %7 = arith.cmpi eq, %5, %6 : vector<8x128xi32>
    %c0_2 = arith.constant 0 : index
    %c0_3 = arith.constant 0 : index
    %8 = memref.load %arg1[%c0_2, %c0_3] : memref<2x2xf32, #tpu.memory_space<smem>>
    %9 = vector.broadcast %8 : f32 to vector<8x128xf32>
    %10 = arith.mulf %9, %0 : vector<8x128xf32>
    %c0_4 = arith.constant 0 : index
    %c1 = arith.constant 1 : index
    %11 = memref.load %arg1[%c0_4, %c1] : memref<2x2xf32, #tpu.memory_space<smem>>
    %12 = vector.broadcast %11 : f32 to vector<8x128xf32>
    %13 = arith.mulf %12, %1 : vector<8x128xf32>
    %14 = arith.addf %10, %13 : vector<8x128xf32>
    %c0_5 = arith.constant 0 : index
    %15 = memref.load %arg2[%c0_5] : memref<2xf32, #tpu.memory_space<smem>>
    %16 = vector.broadcast %15 : f32 to vector<8x128xf32>
    %17 = arith.addf %14, %16 : vector<8x128xf32>
    %c1_6 = arith.constant 1 : index
    %c0_7 = arith.constant 0 : index
    %18 = memref.load %arg1[%c1_6, %c0_7] : memref<2x2xf32, #tpu.memory_space<smem>>
    %19 = vector.broadcast %18 : f32 to vector<8x128xf32>
    %20 = arith.mulf %19, %2 : vector<8x128xf32>
    %c1_8 = arith.constant 1 : index
    %c1_9 = arith.constant 1 : index
    %21 = memref.load %arg1[%c1_8, %c1_9] : memref<2x2xf32, #tpu.memory_space<smem>>
    %22 = vector.broadcast %21 : f32 to vector<8x128xf32>
    %23 = arith.mulf %22, %0 : vector<8x128xf32>
    %24 = arith.addf %20, %23 : vector<8x128xf32>
    %c1_10 = arith.constant 1 : index
    %25 = memref.load %arg2[%c1_10] : memref<2xf32, #tpu.memory_space<smem>>
    %26 = vector.broadcast %25 : f32 to vector<8x128xf32>
    %27 = arith.addf %24, %26 : vector<8x128xf32>
    %28 = arith.select %7, %17, %27 : vector<8x128xi1>, vector<8x128xf32>
    %c0_11 = arith.constant 0 : index
    %c0_12 = arith.constant 0 : index
    %29 = vector.load %arg4[%c0_11, %c0_12] : memref<8x128xf32, #tpu.memory_space<vmem>>, vector<8x128xf32>
    tpu.vector_store %arg4[%c0_11, %c0_12], %28 {strides = array<i32>} : memref<8x128xf32, #tpu.memory_space<vmem>>, vector<8x128xf32>,
    return
  }
  func.func @transform_0(%arg0: i32) -> (i32, i32) {
    %c0_i32 = arith.constant 0 : i32
    %c0_i32_0 = arith.constant 0 : i32
    %c0_i32_1 = arith.constant 0 : i32
    return %c0_i32, %c0_i32_0 : i32, i32
  }
  func.func @transform_1(%arg0: i32) -> i32 {
    %c0_i32 = arith.constant 0 : i32
    %c0_i32_0 = arith.constant 0 : i32
    return %c0_i32 : i32
  }
  func.func @transform_2(%arg0: i32) -> (i32, i32) {
    %c0_i32 = arith.constant 0 : i32
    %c0_i32_0 = arith.constant 0 : i32
    return %arg0, %c0_i32 : i32, i32
  }
  func.func @transform_3(%arg0: i32) -> (i32, i32) {
    %c0_i32 = arith.constant 0 : i32
    %c0_i32_0 = arith.constant 0 : i32
    return %arg0, %c0_i32 : i32, i32
  }
}

</mosaic_0001>

<llo_original>
// kernel: tpu_custom_call.1
$region0: #{tpu_custom_call.1}
  #allocation0 [shape = 'u32[]', space=smem, size = 0x4, offset = 0x4, fixed_abs, tag = 'smem constant byte address 0x4 - core index']
  #allocation1 [shape = 'u32[72,128]{1,0:T(1,128)}', space=vmem, size = 0x9000, scoped, tag = 'internal scratch']
  %s0 = inlined_call_operand.hbm [shape: f32[2,2], index: 0, kind: input, shape index: {}]
  %s1 = inlined_call_operand.hbm [shape: f32[2], index: 1, kind: input, shape index: {}]
  %s2 = inlined_call_operand.hbm [shape: f32[8,128], index: 2, kind: input, shape index: {}]
  %s3 = inlined_call_operand.hbm [shape: f32[8,128], index: 3, kind: output, shape index: {}]
  %s4 = sld [smem:[#allocation0]]
  $region34: #{tpu_custom_call.1} parent=0
    _
  %s6 = ssub.s32 1, %s4
  %s7 = scalar_select 0, %s6, %s4
  $region1: #{tpu_custom_call.1} parent=0
    #allocation2 [shape = 'u8[1024]{0}', space=smem, size = 0x400, scoped, tag = 'input window, operand 0, single buffered']
    #allocation3 [shape = 's32[1]{0}', space=sflag, size = 0x4, scoped, tag = 'scoped memory for tpu_custom_call.1']
    #allocation4 [shape = 's32[1]{0}', space=sflag, size = 0x4, scoped, tag = 'scoped memory for tpu_custom_call.1']
    #allocation5 [shape = 's32[1]{0}', space=sflag, size = 0x4, scoped, tag = 'scoped memory for tpu_custom_call.1']
    #allocation6 [shape = 'u8[512]{0}', space=smem, size = 0x200, scoped, tag = 'input window, operand 1, single buffered']
    #allocation7 [shape = 's32[1]{0}', space=sflag, size = 0x4, scoped, tag = 'scoped memory for tpu_custom_call.1']
    #allocation8 [shape = 'u8[4096]{0}', space=vmem, size = 0x1000, scoped, tag = 'input window, operand 2, single buffered']
    #allocation9 [shape = 'u8[4096]{0}', space=vmem, size = 0x1000, scoped, tag = 'output window, operand 0, single buffered']
    %8 = vsyncpa [#allocation5], 0
    %9 = vsyncpa [#allocation7], 0
    %10 = vsyncpa [#allocation3], 0
    %11 = vsyncpa [#allocation4], 0
    // Predicated region
    $region2: #{tpu_custom_call.1} parent=1 // pred_check
      _
    $region3: #{tpu_custom_call.1} parent=1 // pred_check_branch
      %13 = sbr.rel (0) target = $region5
    $region4: #{tpu_custom_call.1} parent=1 // pred_region
      %15 = vsyncadd [#allocation5], 0
      %s17 = sshll.u32 %s0, 4
      %s18 = int_to_ptr.hbm [resolvable:$true] %s17
      %20 = dma.hbm_to_smem %s18, 32, [#allocation2], [#allocation5]
    $region5: #{tpu_custom_call.1} parent=1 // pred_fallthru
      _
    // Predicated region
    $region6: #{tpu_custom_call.1} parent=1 // pred_check
      _
    $region7: #{tpu_custom_call.1} parent=1 // pred_check_branch
      %22 = sbr.rel (0) target = $region9
    $region8: #{tpu_custom_call.1} parent=1 // pred_region
      %24 = vsyncadd [#allocation7], 0
      %s26 = sshll.u32 %s1, 4
      %s27 = int_to_ptr.hbm [resolvable:$true] %s26
      %29 = dma.hbm_to_smem %s27, 16, [#allocation6], [#allocation7]
    $region9: #{tpu_custom_call.1} parent=1 // pred_fallthru
      _
    // Predicated region
    $region10: #{tpu_custom_call.1} parent=1 // pred_check
      _
    $region11: #{tpu_custom_call.1} parent=1 // pred_check_branch
      %31 = sbr.rel (0) target = $region13
    $region12: #{tpu_custom_call.1} parent=1 // pred_region
      %33 = vsyncadd [#allocation3], 0
      %s35 = sshll.u32 %s2, 4
      %s36 = int_to_ptr.hbm [resolvable:$true] %s35
      %s37 = sshll.u32 [#allocation8], 4
      %s38 = int_to_ptr.vmem [resolvable:$true] %s37
      %40 = dma.hbm_to_vmem [thread:$0]  %s36, 128, %s38, [#allocation3]
    $region13: #{tpu_custom_call.1} parent=1 // pred_fallthru
      _
    // Predicated region
    $region14: #{tpu_custom_call.1} parent=1 // pred_check
      _
    $region15: #{tpu_custom_call.1} parent=1 // pred_check_branch
      %42 = sbr.rel (0) target = $region17
    $region16: #{tpu_custom_call.1} parent=1 // pred_region
      %44 = dma.done [#allocation5], 32
    $region17: #{tpu_custom_call.1} parent=1 // pred_fallthru
      _
    // Predicated region
    $region18: #{tpu_custom_call.1} parent=1 // pred_check
      _
    $region19: #{tpu_custom_call.1} parent=1 // pred_check_branch
      %46 = sbr.rel (0) target = $region21
    $region20: #{tpu_custom_call.1} parent=1 // pred_region
      %48 = dma.done [#allocation7], 16
    $region21: #{tpu_custom_call.1} parent=1 // pred_fallthru
      _
    // Predicated region
    $region22: #{tpu_custom_call.1} parent=1 // pred_check
      _
    $region23: #{tpu_custom_call.1} parent=1 // pred_check_branch
      %50 = sbr.rel (0) target = $region25
    $region24: #{tpu_custom_call.1} parent=1 // pred_region
      %52 = dma.done [#allocation3], 128
    $region25: #{tpu_custom_call.1} parent=1 // pred_fallthru
      _
    %53 = sfence
    %v54 = vld [vmem:[#allocation8] sm:$0xff]
    %55 = vrot.lane.b32.xlu0 %v54, 127
    %v56 = vpop.permute.xlu0 %55
    %57 = vrot.lane.b32.xlu0 %v54, 1
    %v58 = vpop.permute.xlu0 %57
    %v59 = vlaneseq
    %v60 = vand.u32 %v59, 127
    %v61 = vand.u32 %v60, 1
    %vm62 = vcmp.eq.s32.totalorder %v61, 0
    %s63 = sld [smem:[#allocation2]]
    %v64 = vstv %s63
    %v65 = vmul.f32 %v64, %v54
    %s66 = sld [smem:[#allocation2 + $0x1]]
    %v67 = vstv %s66
    %v68 = vmul.f32 %v67, %v56
    %v69 = vadd.f32 %v65, %v68
    %s70 = sld [smem:[#allocation6]]
    %v71 = vstv %s70
    %v72 = vadd.f32 %v69, %v71
    %s73 = sld [smem:[#allocation2 + $0x80]]
    %v74 = vstv %s73
    %v75 = vmul.f32 %v74, %v58
    %s76 = sld [smem:[#allocation2 + $0x81]]
    %v77 = vstv %s76
    %v78 = vmul.f32 %v77, %v54
    %v79 = vadd.f32 %v75, %v78
    %s80 = sld [smem:[#allocation6 + $0x1]]
    %v81 = vstv %s80
    %v82 = vadd.f32 %v79, %v81
    %v83 = vsel %vm62, %v72, %v82
    %84 = vst [vmem:[#allocation9] sm:$0xff] %v83
    // Predicated region
    $region26: #{tpu_custom_call.1} parent=1 // pred_check
      _
    $region27: #{tpu_custom_call.1} parent=1 // pred_check_branch
      %86 = sbr.rel (0) target = $region29
    $region28: #{tpu_custom_call.1} parent=1 // pred_region
      %88 = vsyncadd [#allocation4], 0
      %s90 = sshll.u32 [#allocation9], 4
      %s91 = int_to_ptr.vmem [resolvable:$true] %s90
      %s92 = sshll.u32 %s3, 4
      %s93 = int_to_ptr.hbm [resolvable:$true] %s92
      %95 = dma.vmem_to_hbm [thread:$0]  %s91, 128, %s93, [#allocation4]
    $region29: #{tpu_custom_call.1} parent=1 // pred_fallthru
      _
    // Predicated region
    $region30: #{tpu_custom_call.1} parent=1 // pred_check
      _
    $region31: #{tpu_custom_call.1} parent=1 // pred_check_branch
      %97 = sbr.rel (0) target = $region33
    $region32: #{tpu_custom_call.1} parent=1 // pred_region
      %99 = dma.done [#allocation4], 128
    $region33: #{tpu_custom_call.1} parent=1 // pred_fallthru
      _
    %100 = vsyncpa [#allocation3], 1
    %101 = vsyncpa [#allocation4], 1
    %102 = vsyncpa [#allocation5], 1
    %103 = vsyncpa [#allocation7], 1

</llo_original>
